<compile_context>
chip_gen: v5e
topology: v5e:2x2
jax: 0.10.0
libtpu: 0.0.40
codegen_flags: <defaults>
</compile_context>

<pallas_src>
import functools

import jax
import jax.numpy as jnp
from jax import lax
from jax.experimental import pallas as pl
from jax.experimental.pallas import tpu as pltpu


# ----------------------------------------------------------------------------
# Fast path: one-pass fused kernel. Per grid step: (Bt, C, HW) slab in VMEM.
# ----------------------------------------------------------------------------
def _se_fused_kernel(x_ref, w1t_ref, w2t_ref, o_ref, *, mode, inv_hw):
    # x_ref/o_ref: (Bt, C, HW) in the input dtype (never upcast the slab)
    # w1t_ref: (C, C//r) f32 ; w2t_ref: (C//r, C) f32  (VMEM resident)
    x = x_ref[...]

    # ---- squeeze: global pooling over the (lane) spatial axis --------------
    if mode == "max":
        v = jnp.max(x, axis=-1).astype(jnp.float32)              # (Bt, C)
    else:  # avg: f32 accumulation, divide by true HW
        v = jnp.sum(x, axis=-1, dtype=jnp.float32) * inv_hw      # (Bt, C)

    # ---- excitation: Linear -> ReLU -> Linear -> sigmoid (all f32) ---------
    h = jnp.maximum(
        jnp.dot(v, w1t_ref[...], preferred_element_type=jnp.float32), 0.0)
    s = jax.nn.sigmoid(
        jnp.dot(h, w2t_ref[...], preferred_element_type=jnp.float32))  # (Bt, C)

    # ---- scale: per-(b, c) gate, multiply in the input dtype ---------------
    o_ref[...] = x * s[:, :, None].astype(x.dtype)


# ----------------------------------------------------------------------------
# Fallback path (phase 0): HW-tiled pooling accumulation into (1, C, 1) f32.
# ----------------------------------------------------------------------------
def _se_pool_kernel(x_ref, o_ref, *, mode, hw, hw_tile):
    j = pl.program_id(1)

    @pl.when(j == 0)
    def _():
        init = -jnp.inf if mode == "max" else 0.0
        o_ref[...] = jnp.full(o_ref.shape, init, dtype=o_ref.dtype)

    x = x_ref[...].astype(jnp.float32)                            # (1, C, T)
    # Mask the ragged tail tile (OOB columns of a partial block are garbage).
    col = lax.broadcasted_iota(jnp.int32, x.shape, 2) + j * hw_tile
    valid = col < hw
    if mode == "max":
        xm = jnp.where(valid, x, -jnp.inf)
        o_ref[...] = jnp.maximum(o_ref[...], jnp.max(xm, axis=-1, keepdims=True))
    else:
        xm = jnp.where(valid, x, 0.0)
        o_ref[...] = o_ref[...] + jnp.sum(xm, axis=-1, keepdims=True)


# ----------------------------------------------------------------------------
# Fallback path (phase 1): HW-tiled rescale by the precomputed gate.
# ----------------------------------------------------------------------------
def _se_scale_kernel(x_ref, g_ref, o_ref):
    # x_ref/o_ref: (1, C, T); g_ref: (1, C, 1) in the input dtype
    o_ref[...] = x_ref[...] * g_ref[...]


def _vmem_budget():
    try:
        cap = int(pltpu.get_tpu_info().vmem_capacity_bytes)
    except Exception:
        cap = 64 * 2**20
    return max(8 * 2**20, cap - 8 * 2**20)   # leave headroom for Mosaic scratch


def se_block(x, w1, w2, *, mode="avg", force_two_phase=False, hw_tile=None):
    """SE block forward.

    x  : (B, C, H, W)
    w1 : (C//ratio, C)  first Linear weight (PyTorch (out, in) convention)
    w2 : (C, C//ratio)  second Linear weight
    """
    assert mode in ("avg", "max")
    b, c, h, w = x.shape
    hw = h * w
    itemsize = x.dtype.itemsize

    x_flat = x.reshape(b, c, hw)
    # Pre-transpose and pre-cast the tiny excitation weights (done once, not
    # per grid step).
    w1t = w1.T.astype(jnp.float32)   # (C, C//r)
    w2t = w2.T.astype(jnp.float32)   # (C//r, C)

    budget = _vmem_budget()
    per_batch_bytes = c * hw * itemsize
    w_bytes = (w1t.size + w2t.size) * 4
    # Fused path needs 2x in + 2x out double-buffers of one (Bt, C, HW) tile.
    fused_fits = (4 * per_batch_bytes + w_bytes + (2 << 20)) <= budget

    if fused_fits and not force_two_phase:
        # ---- one-pass fused path -------------------------------------------
        bt = int(min(b, max(1, budget // max(1, 5 * per_batch_bytes))))
        if bt >= b and b >= 2:
            bt = -(-b // 2)          # keep grid >= 2 for v7x megacore balance
        grid_b = pl.cdiv(b, bt)
        vmem_limit = int(min(budget,
                             max(16 << 20,
                                 4 * bt * per_batch_bytes + w_bytes + (4 << 20))))

        kernel = functools.partial(_se_fused_kernel, mode=mode, inv_hw=1.0 / hw)
        out_flat = pl.pallas_call(
            kernel,
            out_shape=jax.ShapeDtypeStruct((b, c, hw), x.dtype),
            grid=(grid_b,),
            in_specs=[
                pl.BlockSpec((bt, c, hw), lambda i: (i, 0, 0)),
                # Constant index_maps: weights stay VMEM-resident, no re-DMA.
                pl.BlockSpec(w1t.shape, lambda i: (0, 0)),
                pl.BlockSpec(w2t.shape, lambda i: (0, 0)),
            ],
            out_specs=pl.BlockSpec((bt, c, hw), lambda i: (i, 0, 0)),
            compiler_params=pltpu.CompilerParams(
                dimension_semantics=("parallel",),
                vmem_limit_bytes=vmem_limit,
            ),
        )(x_flat, w1t, w2t)
        return out_flat.reshape(b, c, h, w)

    # ---- two-phase HW-tiled fallback (slab too large for VMEM) -------------
    lane = 128
    if hw_tile is None:
        cols = budget // max(1, 6 * c * itemsize)
        hw_tile = int(max(lane, (cols // lane) * lane))
    hw_tile = int(min(hw_tile, ((hw + lane - 1) // lane) * lane))
    hw_tile = max(lane, (hw_tile // lane) * lane)
    n_hw = pl.cdiv(hw, hw_tile)
    tile_bytes = c * hw_tile * itemsize
    vmem_limit = int(min(budget, max(16 << 20, 6 * tile_bytes + (4 << 20))))

    # Phase 0: per-channel sum/max accumulated over HW tiles.
    pooled = pl.pallas_call(
        functools.partial(_se_pool_kernel, mode=mode, hw=hw, hw_tile=hw_tile),
        out_shape=jax.ShapeDtypeStruct((b, c, 1), jnp.float32),
        grid=(b, n_hw),
        in_specs=[pl.BlockSpec((1, c, hw_tile), lambda i, j: (i, 0, j))],
        out_specs=pl.BlockSpec((1, c, 1), lambda i, j: (i, 0, 0)),
        compiler_params=pltpu.CompilerParams(
            dimension_semantics=("parallel", "arbitrary"),
            vmem_limit_bytes=vmem_limit,
        ),
    )(x_flat)

    # Tiny excitation MLP on the (B, C) pooled vector (negligible work).
    v = pooled.reshape(b, c)
    if mode == "avg":
        v = v * (1.0 / hw)
    hmid = jnp.maximum(v @ w1t, 0.0)
    gate = jax.nn.sigmoid(hmid @ w2t).astype(x.dtype).reshape(b, c, 1)

    # Phase 1: re-stream HW tiles and scale by the per-(b, c) gate.
    out_flat = pl.pallas_call(
        _se_scale_kernel,
        out_shape=jax.ShapeDtypeStruct((b, c, hw), x.dtype),
        grid=(b, n_hw),
        in_specs=[
            pl.BlockSpec((1, c, hw_tile), lambda i, j: (i, 0, j)),
            pl.BlockSpec((1, c, 1), lambda i, j: (i, 0, 0)),
        ],
        out_specs=pl.BlockSpec((1, c, hw_tile), lambda i, j: (i, 0, j)),
        compiler_params=pltpu.CompilerParams(
            dimension_semantics=("parallel", "parallel"),
            vmem_limit_bytes=vmem_limit,
        ),
    )(x_flat, gate)
    return out_flat.reshape(b, c, h, w)


def _reference(x, w1, w2, *, mode="avg"):
    if mode == "max":
        v = jnp.max(x, axis=(2, 3))
    else:
        v = jnp.mean(x, axis=(2, 3))
    h = jnp.maximum(v @ w1.T, 0.0)
    s = jax.nn.sigmoid(h @ w2.T)
    return x * s[:, :, None, None]


if __name__ == "__main__":
    key = jax.random.PRNGKey(0)
    kx, k1, k2, kx2, kx3, k3, k4 = jax.random.split(key, 7)

    B, C, ratio = 2, 4, 2
    # Shapes follow nn.Linear(C, C//r) / nn.Linear(C//r, C), bias=False.
    w1 = jax.random.normal(k1, (C // ratio, C), dtype=jnp.float32) * 0.1
    w2 = jax.random.normal(k2, (C, C // ratio), dtype=jnp.float32) * 0.1

    # Fused path, lane-aligned spatial size (16*16 = 256).
    x = jax.random.normal(kx, (B, C, 16, 16), dtype=jnp.float32)
    for mode in ("avg", "max"):
        out = jax.block_until_ready(se_block(x, w1, w2, mode=mode))
        ref = _reference(x, w1, w2, mode=mode)
        assert out.shape == x.shape
        assert jnp.allclose(out, ref, atol=1e-5, rtol=1e-5), f"mismatch mode={mode}"

    # Fused path, non-multiple-of-128 spatial size (7*7 = 49): whole-HW block,
    # no pad / no output slice.
    x2 = jax.random.normal(kx2, (B, C, 7, 7), dtype=jnp.float32)
    for mode in ("avg", "max"):
        out = jax.block_until_ready(se_block(x2, w1, w2, mode=mode))
        ref = _reference(x2, w1, w2, mode=mode)
        assert out.shape == x2.shape
        assert jnp.allclose(out, ref, atol=1e-5, rtol=1e-5), f"mismatch 7x7 mode={mode}"

    # Two-phase HW-tiled fallback (the path used when a per-batch slab exceeds
    # the VMEM budget, e.g. on v7x), forced here at a small shape with a
    # ragged last HW tile (20*20 = 400, tiles of 128).
    C3 = 8
    w3 = jax.random.normal(k3, (C3 // ratio, C3), dtype=jnp.float32) * 0.1
    w4 = jax.random.normal(k4, (C3, C3 // ratio), dtype=jnp.float32) * 0.1
    x3 = jax.random.normal(kx3, (B, C3, 20, 20), dtype=jnp.float32)
    for mode in ("avg", "max"):
        out = jax.block_until_ready(
            se_block(x3, w3, w4, mode=mode, force_two_phase=True, hw_tile=128))
        ref = _reference(x3, w3, w4, mode=mode)
        assert out.shape == x3.shape
        assert jnp.allclose(out, ref, atol=1e-5, rtol=1e-5), f"mismatch 2phase mode={mode}"

    print("KERNEL_OK")
</pallas_src>

<mosaic_0001>
module attributes {stable_mosaic.version = 11 : i64} {
  func.func @_se_fused_kernel(%arg0: i32, %arg1: memref<1x4x256xf32, #tpu.memory_space<vmem>>, %arg2: memref<4x2xf32, #tpu.memory_space<vmem>>, %arg3: memref<2x4xf32, #tpu.memory_space<vmem>>, %arg4: memref<1x4x256xf32, #tpu.memory_space<vmem>>) attributes {dimension_semantics = [#tpu.dimension_semantics<parallel>], iteration_bounds = array<i64: 2>, scalar_prefetch = 0 : i64, scratch_operands = 0 : i64, tpu.core_type = #tpu.core_type<tc>, window_params = [{transform_indices = @transform_0, window_bounds = array<i64: 1, 4, 256>}, {pipeline_mode = #tpu.pipeline_mode<synchronous>, transform_indices = @transform_1, window_bounds = array<i64: 4, 2>}, {pipeline_mode = #tpu.pipeline_mode<synchronous>, transform_indices = @transform_2, window_bounds = array<i64: 2, 4>}, {transform_indices = @transform_3, window_bounds = array<i64: 1, 4, 256>}]} {
    %c0 = arith.constant 0 : index
    %c0_0 = arith.constant 0 : index
    %c0_1 = arith.constant 0 : index
    %0 = vector.load %arg1[%c0, %c0_0, %c0_1] : memref<1x4x256xf32, #tpu.memory_space<vmem>>, vector<1x4x256xf32>
    %cst = arith.constant dense<0.000000e+00> : vector<1x4xf32>
    %1 = vector.multi_reduction <add>, %0, %cst [2] : vector<1x4x256xf32> to vector<1x4xf32>
    %cst_2 = arith.constant 3.906250e-03 : f32
    %2 = vector.broadcast %cst_2 : f32 to vector<1x4xf32>
    %3 = arith.mulf %1, %2 : vector<1x4xf32>
    %c0_3 = arith.constant 0 : index
    %c0_4 = arith.constant 0 : index
    %4 = vector.load %arg2[%c0_3, %c0_4] : memref<4x2xf32, #tpu.memory_space<vmem>>, vector<4x2xf32>
    %cst_5 = arith.constant dense<0.000000e+00> : vector<1x2xf32>
    %5 = tpu.matmul %3, %4, %cst_5 {dimension_numbers = #tpu.dot_dimension_numbers<[1], [0], [0], [1], [0, 0, 1, 1], [], []>} : vector<1x4xf32>, vector<4x2xf32>, vector<1x2xf32> -> vector<1x2xf32>
    %cst_6 = arith.constant 0.000000e+00 : f32
    %6 = vector.broadcast %cst_6 : f32 to vector<1x2xf32>
    %7 = arith.maximumf %5, %6 : vector<1x2xf32>
    %c0_7 = arith.constant 0 : index
    %c0_8 = arith.constant 0 : index
    %8 = vector.load %arg3[%c0_7, %c0_8] : memref<2x4xf32, #tpu.memory_space<vmem>>, vector<2x4xf32>
    %cst_9 = arith.constant dense<0.000000e+00> : vector<1x4xf32>
    %9 = tpu.matmul %7, %8, %cst_9 {dimension_numbers = #tpu.dot_dimension_numbers<[1], [0], [0], [1], [0, 0, 1, 1], [], []>} : vector<1x2xf32>, vector<2x4xf32>, vector<1x4xf32> -> vector<1x4xf32>
    %10 = arith.negf %9 : vector<1x4xf32>
    %11 = math.exp %10 : vector<1x4xf32>
    %cst_10 = arith.constant 1.000000e+00 : f32
    %12 = vector.broadcast %cst_10 : f32 to vector<1x4xf32>
    %13 = arith.addf %12, %11 : vector<1x4xf32>
    %14 = arith.divf %12, %13 : vector<1x4xf32>
    %15 = vector.shape_cast %14 : vector<1x4xf32> to vector<1x4x1xf32>
    %16 = vector.broadcast %15 : vector<1x4x1xf32> to vector<1x4x256xf32>
    %17 = arith.mulf %0, %16 : vector<1x4x256xf32>
    %c0_11 = arith.constant 0 : index
    %c0_12 = arith.constant 0 : index
    %c0_13 = arith.constant 0 : index
    %18 = vector.load %arg4[%c0_11, %c0_12, %c0_13] : memref<1x4x256xf32, #tpu.memory_space<vmem>>, vector<1x4x256xf32>
    tpu.vector_store %arg4[%c0_11, %c0_12, %c0_13], %17 {strides = array<i32>} : memref<1x4x256xf32, #tpu.memory_space<vmem>>, vector<1x4x256xf32>,
    return
  }
  func.func @transform_0(%arg0: i32) -> (i32, i32, i32) {
    %c0_i32 = arith.constant 0 : i32
    %c0_i32_0 = arith.constant 0 : i32
    %c0_i32_1 = arith.constant 0 : i32
    return %arg0, %c0_i32, %c0_i32_0 : i32, i32, i32
  }
  func.func @transform_1(%arg0: i32) -> (i32, i32) {
    %c0_i32 = arith.constant 0 : i32
    %c0_i32_0 = arith.constant 0 : i32
    %c0_i32_1 = arith.constant 0 : i32
    return %c0_i32, %c0_i32_0 : i32, i32
  }
  func.func @transform_2(%arg0: i32) -> (i32, i32) {
    %c0_i32 = arith.constant 0 : i32
    %c0_i32_0 = arith.constant 0 : i32
    %c0_i32_1 = arith.constant 0 : i32
    return %c0_i32, %c0_i32_0 : i32, i32
  }
  func.func @transform_3(%arg0: i32) -> (i32, i32, i32) {
    %c0_i32 = arith.constant 0 : i32
    %c0_i32_0 = arith.constant 0 : i32
    %c0_i32_1 = arith.constant 0 : i32
    return %arg0, %c0_i32, %c0_i32_0 : i32, i32, i32
  }
}

</mosaic_0001>

<llo_original>
// kernel: tpu_custom_call.1
$region0: #{tpu_custom_call.1}
  #allocation0 [shape = 'u32[]', space=smem, size = 0x4, offset = 0x4, fixed_abs, tag = 'smem constant byte address 0x4 - core index']
  #allocation1 [shape = 'u32[72,128]{1,0:T(1,128)}', space=vmem, size = 0x9000, scoped, tag = 'internal scratch']
  %s0 = inlined_call_operand.hbm [shape: f32[2,4,256], index: 0, kind: input, shape index: {}]
  %s1 = inlined_call_operand.vmem [shape: f32[4,2], index: 1, kind: input, shape index: {}]
  %s2 = inlined_call_operand.vmem [shape: f32[2,4], index: 2, kind: input, shape index: {}]
  %s3 = inlined_call_operand.hbm [shape: f32[2,4,256], index: 3, kind: output, shape index: {}]
  %s4 = sld [smem:[#allocation0]]
  $region49: #{tpu_custom_call.1} parent=0
    _
  %s6 = ssub.s32 1, %s4
  %s7 = scalar_select 0, %s6, %s4
  $region1: #{tpu_custom_call.1} parent=0
    #allocation2 [shape = 'u8[8192]{0}', space=vmem, size = 0x2000, scoped, tag = 'input window, operand 0']
    #allocation3 [shape = 's32[2]{0}', space=sflag, size = 0x8, scoped, tag = 'scoped memory for tpu_custom_call.1']
    #allocation4 [shape = 's32[2]{0}', space=sflag, size = 0x8, scoped, tag = 'scoped memory for tpu_custom_call.1']
    #allocation5 [shape = 'u8[8192]{0}', space=vmem, size = 0x2000, scoped, tag = 'output window, operand 0']
    %8 = vsyncpa [#allocation3], 0
    %s9 = scalar_lea.sflag [#allocation3], 1
    %10 = vsyncpa %s9, 0
    %11 = vsyncpa [#allocation4], 0
    %s12 = scalar_lea.sflag [#allocation4], 1
    %13 = vsyncpa %s12, 0
    loop: start=0, step=1, limit=4
    $region2: #{tpu_custom_call.1} parent=1 // loop_pre_header
      _
    $region3: #{tpu_custom_call.1} parent=1 // loop_header
      %s15 = sphi 0, %s19
      %p16 = scmp.ge.s32.totalorder %s15, 4
      %s25 = sphi 0, %s27
      %s28 = sphi 0, %s25
      %s29 = sphi 0, %s28
      %s45 = sphi 0, %s29
      %s49 = sphi 0, %s49
      %s51 = sphi 0, %s49
      %s52 = sphi 0, %s51
      %s66 = sphi 0, %s52
      %s70 = sphi 0, %s70
      %s72 = sphi 0, %s70
      %s73 = sphi 0, %s72
      %s87 = sphi 0, %s73
      %s93 = sphi 0, %s95
      %s96 = sphi 0, %s93
      %s97 = sphi 0, %s96
      %s113 = sphi 0, %s97
    $region4: #{tpu_custom_call.1} parent=1 // loop_header_branch
      %18 = sbr.rel (%p16) target = $region8
    $region5: #{tpu_custom_call.1} parent=1 // loop_body
      %s20 = ssub.s32 %s15, 1
      %s21 = ssub.s32 %s15, 2
      %s22 = sadd.s32 %s15, 1
      %s23 = ssub.s32 %s15, %s22
      %p24 = scmp.eq.s32.totalorder %s23, 0
      %s26 = sadd.s32 %s25, 1
      %s27 = scalar_select %p24, %s25, %s26
      %p30 = pneg %p24
      %p31 = scmp.eq.s32.totalorder %s15, 1
      %p32 = por %p30, %p31
      %p33 = scmp.ne.s32.totalorder %s25, %s28
      %p34 = scmp.eq.s32.totalorder %s15, 0
      %p35 = por %p33, %p34
      %p36 = scmp.ne.s32.totalorder %s25, %s28
      %p37 = scmp.eq.s32.totalorder %s20, 1
      %p38 = por %p36, %p37
      %p39 = scmp.ne.s32.totalorder %s28, %s29
      %p40 = scmp.eq.s32.totalorder %s20, 0
      %p41 = por %p39, %p40
      %p42 = scmp.ne.s32.totalorder %s28, %s29
      %p43 = scmp.eq.s32.totalorder %s21, 1
      %p44 = por %p42, %p43
      %p46 = scmp.ne.s32.totalorder %s29, %s45
      %p47 = scmp.eq.s32.totalorder %s21, 0
      %p48 = por %p46, %p47
      %s50 = sadd.s32 %s49, 1
      %p53 = scmp.eq.s32.totalorder %s15, 1
      %p54 = scmp.ne.s32.totalorder %s49, %s51
      %p55 = scmp.eq.s32.totalorder %s15, 0
      %p56 = por %p54, %p55
      %p57 = scmp.ne.s32.totalorder %s49, %s51
      %p58 = scmp.eq.s32.totalorder %s20, 1
      %p59 = por %p57, %p58
      %p60 = scmp.ne.s32.totalorder %s51, %s52
      %p61 = scmp.eq.s32.totalorder %s20, 0
      %p62 = por %p60, %p61
      %p63 = scmp.ne.s32.totalorder %s51, %s52
      %p64 = scmp.eq.s32.totalorder %s21, 1
      %p65 = por %p63, %p64
      %p67 = scmp.ne.s32.totalorder %s52, %s66
      %p68 = scmp.eq.s32.totalorder %s21, 0
      %p69 = por %p67, %p68
      %s71 = sadd.s32 %s70, 1
      %p74 = scmp.eq.s32.totalorder %s15, 1
      %p75 = scmp.ne.s32.totalorder %s70, %s72
      %p76 = scmp.eq.s32.totalorder %s15, 0
      %p77 = por %p75, %p76
      %p78 = scmp.ne.s32.totalorder %s70, %s72
      %p79 = scmp.eq.s32.totalorder %s20, 1
      %p80 = por %p78, %p79
      %p81 = scmp.ne.s32.totalorder %s72, %s73
      %p82 = scmp.eq.s32.totalorder %s20, 0
      %p83 = por %p81, %p82
      %p84 = scmp.ne.s32.totalorder %s72, %s73
      %p85 = scmp.eq.s32.totalorder %s21, 1
      %p86 = por %p84, %p85
      %p88 = scmp.ne.s32.totalorder %s73, %s87
      %p89 = scmp.eq.s32.totalorder %s21, 0
      %p90 = por %p88, %p89
      %s91 = ssub.s32 %s15, %s22
      %p92 = scmp.eq.s32.totalorder %s91, 0
      %s94 = sadd.s32 %s93, 1
      %s95 = scalar_select %p92, %s93, %s94
      %p98 = pneg %p92
      %p99 = scmp.eq.s32.totalorder %s15, 1
      %p100 = por %p98, %p99
      %p101 = scmp.ne.s32.totalorder %s93, %s96
      %p102 = scmp.eq.s32.totalorder %s15, 0
      %p103 = por %p101, %p102
      %p104 = scmp.ne.s32.totalorder %s93, %s96
      %p105 = scmp.eq.s32.totalorder %s20, 1
      %p106 = por %p104, %p105
      %p107 = scmp.ne.s32.totalorder %s96, %s97
      %p108 = scmp.eq.s32.totalorder %s20, 0
      %p109 = por %p107, %p108
      %p110 = scmp.ne.s32.totalorder %s96, %s97
      %p111 = scmp.eq.s32.totalorder %s21, 1
      %p112 = por %p110, %p111
      %p114 = scmp.ne.s32.totalorder %s97, %s113
      %p115 = scmp.eq.s32.totalorder %s21, 0
      %p116 = por %p114, %p115
      %p117 = scmp.le.s32.totalorder 1, %s15
      %p118 = scmp.lt.s32.totalorder %s15, 3
      %p119 = pnand %p117, %p118
      %p120 = pneg %p119
      // Predicated region
      $region9: #{tpu_custom_call.1} parent=5 // pred_check
        _
      $region10: #{tpu_custom_call.1} parent=5 // pred_check_branch
        %122 = sbr.rel (%p119) target = $region12
      $region11: #{tpu_custom_call.1} parent=5 // pred_region
        %s123 = ssub.s32 %s15, 1
        // Predicated region
        $region13: #{tpu_custom_call.1} parent=11 // pred_check
          %p124 = pneg %p62
        $region14: #{tpu_custom_call.1} parent=11 // pred_check_branch
          %126 = sbr.rel (%p124) target = $region16
        $region15: #{tpu_custom_call.1} parent=11 // pred_region
          _
        $region16: #{tpu_custom_call.1} parent=11 // pred_fallthru
          _
        // Predicated region
        $region17: #{tpu_custom_call.1} parent=11 // pred_check
          %p127 = pneg %p83
        $region18: #{tpu_custom_call.1} parent=11 // pred_check_branch
          %129 = sbr.rel (%p127) target = $region20
        $region19: #{tpu_custom_call.1} parent=11 // pred_region
          _
        $region20: #{tpu_custom_call.1} parent=11 // pred_fallthru
          _
      $region12: #{tpu_custom_call.1} parent=5 // pred_fallthru
        _
      %p130 = scmp.lt.s32.totalorder %s15, 2
      // Predicated region
      $region21: #{tpu_custom_call.1} parent=5 // pred_check
        %p131 = pneg %p130
      $region22: #{tpu_custom_call.1} parent=5 // pred_check_branch
        %133 = sbr.rel (%p131) target = $region24
      $region23: #{tpu_custom_call.1} parent=5 // pred_region
        // Predicated region
        $region25: #{tpu_custom_call.1} parent=23 // pred_check
          %p134 = pneg %p35
        $region26: #{tpu_custom_call.1} parent=23 // pred_check_branch
          %136 = sbr.rel (%p134) target = $region28
        $region27: #{tpu_custom_call.1} parent=23 // pred_region
          %s137 = sand.u32 %s25, 1
          %s138 = scalar_lea.sflag [#allocation3], %s137
          %s139 = sand.u32 %s25, 1
          %s140 = smul.addr %s139, 8
          %s141 = scalar_lea.vmem [#allocation2], %s140
          %143 = vsyncadd %s138, 0
          %s144 = smul.addr %s15, 2
          %s145 = smul.addr %s144, 4
          %s146 = scalar_lea.hbm %s0, %s145
          %s148 = sshll.u32 %s146, 4
          %s149 = int_to_ptr.hbm [resolvable:$true] %s148
          %s150 = sshll.u32 %s141, 4
          %s151 = int_to_ptr.vmem [resolvable:$true] %s150
          %153 = dma.hbm_to_vmem [thread:$0]  %s149, 128, %s151, %s138
        $region28: #{tpu_custom_call.1} parent=23 // pred_fallthru
          _
      $region24: #{tpu_custom_call.1} parent=5 // pred_fallthru
        _
      %p154 = scmp.le.s32.totalorder 1, %s15
      %p155 = scmp.lt.s32.totalorder %s15, 3
      %p156 = pnand %p154, %p155
      %p157 = pneg %p156
      // Predicated region
      $region29: #{tpu_custom_call.1} parent=5 // pred_check
        _
      $region30: #{tpu_custom_call.1} parent=5 // pred_check_branch
        %159 = sbr.rel (%p156) target = $region32
      $region31: #{tpu_custom_call.1} parent=5 // pred_region
        %s160 = ssub.s32 %s15, 1
        %s161 = sand.u32 %s28, 1
        %s162 = scalar_lea.sflag [#allocation3], %s161
        %s163 = sand.u32 %s28, 1
        %s164 = smul.addr %s163, 8
        %s165 = scalar_lea.vmem [#allocation2], %s164
        // Predicated region
        $region33: #{tpu_custom_call.1} parent=31 // pred_check
          %p166 = pneg %p41
        $region34: #{tpu_custom_call.1} parent=31 // pred_check_branch
          %168 = sbr.rel (%p166) target = $region36
        $region35: #{tpu_custom_call.1} parent=31 // pred_region
          %170 = dma.done %s162, 128
        $region36: #{tpu_custom_call.1} parent=31 // pred_fallthru
          _
        %s171 = sand.u32 %s28, 1
        %s172 = scalar_lea.sflag [#allocation3], %s171
        %s173 = sand.u32 %s28, 1
        %s174 = smul.addr %s173, 8
        %s175 = scalar_lea.vmem [#allocation2], %s174
        %p176 = pneg %p41
        %p177 = pneg %p38
        %p178 = pneg %p62
        %p179 = pneg %p59
        %p180 = pneg %p83
        %p181 = pneg %p80
        %p182 = pneg %p109
        %p183 = pneg %p106
        %s184 = sand.u32 %s96, 1
        %s185 = scalar_lea.sflag [#allocation4], %s184
        %s186 = sand.u32 %s96, 1
        %s187 = smul.addr %s186, 8
        %s188 = scalar_lea.vmem [#allocation5], %s187
        %v189 = vld [vmem:[%s165] sm:$0xff]
        %191 = vst [vmem:[#allocation1] ss:$2 sm:$0xff] %v189
        %v192 = vld.sshfl [vmem:[#allocation1] sm:$0xff pattern:$0x75316420]
        %v193 = vld.sshfl [vmem:[#allocation1 + $0x8] sm:$0xff pattern:$0x75316420]
        %vm196 = vcmask 1043456
        %v197 = vsel %vm196, %v192, 0.0
        %v198 = vsel %vm196, %v193, 0.0
        %v199 = vadd.f32 %v197, %v198
        %200 = vadd.xlane.f32.xlu0 %v199
        %v201 = vpop.xlane.xlu0 %200
        %v202 = vmul.f32 %v201, 0.00390625
        %v203 = vld [vmem:[%s1] sm:$0xf]
        %v205 = vlaneseq
        %v206 = vand.u32 %v205, 127
        %v207 = vperm.slane %v202, %v206
        %vm208 = vcmask 31744
        %v209 = vsel %vm208, %v207, 0
        %v212 = vsel %vm196, %v203, 0
        %214 = vmatpush.msra.mxu0 0.0
        %215 = vmatpush.msra.mxu0 0.0
        %216 = vmatpush.msra.mxu0 0.0
        %217 = vmatpush.msra.mxu0 0.0
        %218 = vmatpush.msra.mxu0 0.0
        %219 = vmatpush.msra.mxu0 0.0
        %220 = vmatpush.msra.mxu0 0.0
        %221 = vmatpush.msra.mxu0 0.0
        %222 = vmatpush.msra.mxu0 0.0
        %223 = vmatpush.msra.mxu0 0.0
        %224 = vmatpush.msra.mxu0 0.0
        %225 = vmatpush.msra.mxu0 0.0
        %226 = vmatpush.msra.mxu0 0.0
        %227 = vmatpush.msra.mxu0 0.0
        %228 = vmatpush.msra.mxu0 0.0
        %229 = vmatpush.msra.mxu0 %v212
        %230 = vmatmul.f32.gmra.mxu0 %v209
        %v231 = vpop.f32.mrf.mxu0
        %v232 = vadd.f32 0.0, %v231
        %233 = vdwg.mxu0
        %v234 = vmax.f32 %v232, 0.0
        %v235 = vld [vmem:[%s2] sm:$0x3]
        %vm236 = vcmask 15360
        %v238 = vsel %vm236, %v234, 0
        %vm240 = vcmask 1041408
        %v242 = vsel %vm240, %v235, 0
        %244 = vmatpush.msra.mxu0 0.0
        %245 = vmatpush.msra.mxu0 0.0
        %246 = vmatpush.msra.mxu0 0.0
        %247 = vmatpush.msra.mxu0 0.0
        %248 = vmatpush.msra.mxu0 0.0
        %249 = vmatpush.msra.mxu0 0.0
        %250 = vmatpush.msra.mxu0 0.0
        %251 = vmatpush.msra.mxu0 0.0
        %252 = vmatpush.msra.mxu0 0.0
        %253 = vmatpush.msra.mxu0 0.0
        %254 = vmatpush.msra.mxu0 0.0
        %255 = vmatpush.msra.mxu0 0.0
        %256 = vmatpush.msra.mxu0 0.0
        %257 = vmatpush.msra.mxu0 0.0
        %258 = vmatpush.msra.mxu0 0.0
        %259 = vmatpush.msra.mxu0 %v242
        %260 = vmatmul.f32.gmra.mxu0 %v238
        %v261 = vpop.f32.mrf.mxu0
        %v262 = vadd.f32 0.0, %v261
        %263 = vdwg.mxu0
        %v264 = vxor.u32 %v262, 2147483648
        %v265 = vmul.f32 %v264, 1.442695
        %v266 = vpow.pop %v265
        %v267 = vadd.f32 %v266, 1.0
        %v268 = vrcp.pop %v267
        %v269 = vmul.f32 %v267, %v268
        %v270 = vsub.f32 1.0, %v269
        %v271 = vmul.f32 %v268, %v270
        %v272 = vadd.f32 %v268, %v271
        %vm273 = vweird.f32 %v267
        %vm274 = vweird.f32 %v268
        %vm275 = vmor %vm273, %vm274
        %v276 = vsel %vm275, %v268, %v272
        %v277 = vand.u32 2147483647, %v267
        %vm278 = vcmp.eq.f32.partialorder %v277, 8.507059e+37
        %v279 = vand.u32 %v267, 2147483648
        %v280 = vor.u32 1.1754944e-38, %v279
        %v281 = vsel %vm278, %v280, %v276
        %v282 = vmul.f32 1.0, %v281
        %v283 = vperm.slane %v282, 0
        %v284 = vlaneseq
        %v285 = vshrl.u32 %v284, 7
        %287 = vset.pattern.permute.xlu0 %v285
        %288 = vperm.xlu0 %287, %v283
        %v289 = vpop.permute.xlu0 %288
        %v292 = vunpack.c.l.s4 839922192
        %v293 = vunpack.c.0.s8 %v292
        %v294 = vperm.slane %v289, %v293
        %v296 = vmul.f32 %v189, %v294
        %297 = vst [vmem:[%s188] sm:$0xff] %v296
        %s298 = sand.u32 %s96, 1
        %s299 = scalar_lea.sflag [#allocation4], %s298
        %s300 = sand.u32 %s96, 1
        %s301 = smul.addr %s300, 8
        %s302 = scalar_lea.vmem [#allocation5], %s301
        // Predicated region
        $region37: #{tpu_custom_call.1} parent=31 // pred_check
          %p303 = pneg %p106
        $region38: #{tpu_custom_call.1} parent=31 // pred_check_branch
          %305 = sbr.rel (%p303) target = $region40
        $region39: #{tpu_custom_call.1} parent=31 // pred_region
          %307 = vsyncadd %s299, 0
          %s308 = smul.addr %s20, 2
          %s309 = smul.addr %s308, 4
          %s310 = scalar_lea.hbm %s3, %s309
          %s312 = sshll.u32 %s302, 4
          %s313 = int_to_ptr.vmem [resolvable:$true] %s312
          %s314 = sshll.u32 %s310, 4
          %s315 = int_to_ptr.hbm [resolvable:$true] %s314
          %317 = dma.vmem_to_hbm [thread:$0]  %s313, 128, %s315, %s299
        $region40: #{tpu_custom_call.1} parent=31 // pred_fallthru
          _
      $region32: #{tpu_custom_call.1} parent=5 // pred_fallthru
        _
      %p318 = scmp.le.s32.totalorder 2, %s15
      // Predicated region
      $region41: #{tpu_custom_call.1} parent=5 // pred_check
        %p319 = pneg %p318
      $region42: #{tpu_custom_call.1} parent=5 // pred_check_branch
        %321 = sbr.rel (%p319) target = $region44
      $region43: #{tpu_custom_call.1} parent=5 // pred_region
        %s322 = ssub.s32 %s15, 2
        // Predicated region
        $region45: #{tpu_custom_call.1} parent=43 // pred_check
          %p323 = pneg %p112
        $region46: #{tpu_custom_call.1} parent=43 // pred_check_branch
          %325 = sbr.rel (%p323) target = $region48
        $region47: #{tpu_custom_call.1} parent=43 // pred_region
          %s326 = sand.u32 %s97, 1
          %s327 = scalar_lea.sflag [#allocation4], %s326
          %s328 = sand.u32 %s97, 1
          %s329 = smul.addr %s328, 8
          %s330 = scalar_lea.vmem [#allocation5], %s329
          %332 = dma.done %s327, 128
        $region48: #{tpu_custom_call.1} parent=43 // pred_fallthru
          _
      $region44: #{tpu_custom_call.1} parent=5 // pred_fallthru
        _
    $region6: #{tpu_custom_call.1} parent=1 // loop_footer
      %s19 = sadd.s32 1, %s15
    $region7: #{tpu_custom_call.1} parent=1 // loop_footer_branch
      %14 = sbr.rel target = $region3
    $region8: #{tpu_custom_call.1} parent=1 // loop_exit
      _
    %333 = vsyncpa [#allocation3], 1
    %s334 = scalar_lea.sflag [#allocation3], 1
    %335 = vsyncpa %s334, 1
    %336 = vsyncpa [#allocation4], 1
    %s337 = scalar_lea.sflag [#allocation4], 1
    %338 = vsyncpa %s337, 1

</llo_original>
